<compile_context>
chip_gen: v5e
topology: v5e:2x2
jax: 0.10.0
libtpu: 0.0.40
codegen_flags: <defaults>
</compile_context>

<pallas_src>
import jax
import jax.numpy as jnp
from jax import lax
from jax.experimental import pallas as pl
from jax.experimental.pallas import tpu as pltpu


_NT = (((1,), (1,)), ((), ()))     # contract last dim of both operands (a @ b.T)


def _qfunc_kernel(obs_ref, act_ref, w1o_ref, w1a_ref, b1_ref,
                  w2_ref, b2_ref, w3_ref, b3_ref, out_ref):
    # obs/act arrive in native (TB, dim) layout; cast to bf16 in VREGs.
    obs_b = obs_ref[...].astype(jnp.bfloat16)          # (TB, obs_dim)
    act_b = act_ref[...].astype(jnp.bfloat16)          # (TB, act_dim)

    # Layer 1: (H, K) x (TB, K)^T -> (H, TB).  The obs/act split replaces the
    # torch.cat without materializing the concat anywhere.
    # TODO(synk): fuse into a single K=obs_dim+act_dim matmul once an unaligned
    # lane-axis concat of the (TB,12)/(TB,4) blocks has a guaranteed Mosaic
    # lowering; the extra K=4 MXU pass is negligible next to layer 2.
    h1 = (lax.dot_general(w1o_ref[...], obs_b, _NT,
                          preferred_element_type=jnp.float32)
          + lax.dot_general(w1a_ref[...], act_b, _NT,
                            preferred_element_type=jnp.float32)
          + b1_ref[...])
    h1 = jnp.maximum(h1, 0.0).astype(jnp.bfloat16)

    # Layer 2: (H, H) @ (H, TB) -> (H, TB).
    h2 = jnp.dot(w2_ref[...], h1, preferred_element_type=jnp.float32) + b2_ref[...]
    h2 = jnp.maximum(h2, 0.0).astype(jnp.bfloat16)

    # Layer 3: (1, H) @ (H, TB) -> (1, TB): lane-dense output block; b3 is an
    # SMEM scalar.
    q = jnp.dot(w3_ref[...], h2, preferred_element_type=jnp.float32) + b3_ref[0]
    out_ref[...] = q.astype(out_ref.dtype)


def _round_up(x, m):
    return ((x + m - 1) // m) * m


def _physical_vmem_bytes():
    try:
        return int(pltpu.get_tpu_info().vmem_capacity_bytes)
    except Exception:
        return 64 * 1024 * 1024          # conservative fallback: v7x-sized VMEM


def _vmem_bytes_estimate(tb, hidden, obs_dim, act_dim):
    """Conservative VMEM footprint (default double-buffering everywhere)."""
    lane = 128
    pad = lambda d: _round_up(max(int(d), 1), lane)
    inputs = 2 * tb * (pad(obs_dim) + pad(act_dim)) * 4      # f32 obs/act blocks
    output = 2 * 8 * tb * 4                                  # (1, tb) f32 block
    temps = hidden * tb * 12                                 # h1/h2 f32 + bf16 copies
    weights = 2 * (hidden * (pad(obs_dim) + pad(act_dim)) * 2   # w1_obs / w1_act bf16
                   + hidden * hidden * 2                        # w2 bf16
                   + 8 * pad(hidden) * 2                        # w3 bf16
                   + 2 * hidden * lane * 4)                     # b1 / b2 (H,1) f32
    return inputs + output + temps + weights


def _choose_block_b(B, hidden, obs_dim, act_dim, vmem_budget):
    # Tile caps from the review's VMEM-aware table: huge tiles when H is small
    # (per-step overhead dominated), capped when H>=1024 so v7x (64 MiB) fits.
    cap = 8192 if hidden <= 256 else (4096 if hidden <= 512 else 2048)
    # Target >= 4 grid steps for large B (v7x megacore + double-buffered DMA),
    # never below one 128-lane tile and never beyond what covers B.
    tb = _round_up(max(pl.cdiv(B, 4), 1), 128)
    tb = max(128, min(cap, tb, _round_up(B, 128)))
    while tb > 128 and _vmem_bytes_estimate(tb, hidden, obs_dim, act_dim) > vmem_budget:
        tb -= 128
    return tb


def prepare_qfunction_params(params, obs_dim):
    """One-time weight prep (hoist out of the hot loop): split w1 into obs/act
    halves, cast weights to bf16, reshape biases.  params are PyTorch layout:
    w (out_features, in_features), b (out_features,)."""
    w1, b1, w2, b2, w3, b3 = params
    hidden = w1.shape[0]
    cdt = jnp.bfloat16
    return (
        jnp.asarray(w1[:, :obs_dim], cdt),                    # w1_obs (H, obs_dim)
        jnp.asarray(w1[:, obs_dim:], cdt),                    # w1_act (H, act_dim)
        jnp.asarray(b1, jnp.float32).reshape(hidden, 1),      # (H, 1)
        jnp.asarray(w2, cdt),                                 # (H, H)
        jnp.asarray(b2, jnp.float32).reshape(hidden, 1),      # (H, 1)
        jnp.asarray(w3, cdt).reshape(1, hidden),              # (1, H)
        jnp.asarray(b3, jnp.float32).reshape(1),              # scalar -> SMEM
    )


def qfunction_forward(obs, act, prepared, block_b=None):
    """Pallas QFunction.forward(obs, act) -> (B,).  `prepared` comes from
    prepare_qfunction_params()."""
    w1o, w1a, b1, w2, b2, w3, b3 = prepared
    B, obs_dim = obs.shape
    act_dim = act.shape[1]
    hidden = w1o.shape[0]

    # Generation-aware scoped-VMEM limit: ~100 MiB on v5e/v6e (128 MiB
    # physical), <=48 MiB on v7x (64 MiB physical).
    phys = _physical_vmem_bytes()
    if phys >= 100 * 1024 * 1024:
        vmem_limit = 100 * 1024 * 1024
    else:
        vmem_limit = min(48 * 1024 * 1024, int(phys * 0.75))

    if block_b is None:
        block_b = _choose_block_b(B, hidden, obs_dim, act_dim, int(vmem_limit * 0.9))
    tb = block_b
    grid = (pl.cdiv(B, tb),)

    def batch_spec(cols):
        return pl.BlockSpec((tb, cols), lambda i: (i, 0))

    def const_spec(shape):
        # Grid-invariant operand: constant index_map -> fetched once, resident
        # in VMEM across grid steps.  (Default double-buffering is accounted
        # for in the VMEM budget; pl.Buffered(1) is not relied upon.)
        return pl.BlockSpec(shape, lambda i: (0, 0))

    flops = 2 * B * (hidden * (obs_dim + act_dim) + hidden * hidden + hidden)
    bytes_accessed = (B * (obs_dim + act_dim) * 4 + B * 4
                      + (hidden * (obs_dim + act_dim) + hidden * hidden + hidden) * 2
                      + (2 * hidden + 1) * 4)

    out = pl.pallas_call(
        _qfunc_kernel,
        out_shape=jax.ShapeDtypeStruct((1, B), jnp.float32),
        grid=grid,
        in_specs=[
            batch_spec(obs_dim),                                # obs, native layout
            batch_spec(act_dim),                                # act, native layout
            const_spec((hidden, obs_dim)),                      # w1_obs
            const_spec((hidden, act_dim)),                      # w1_act
            const_spec((hidden, 1)),                            # b1
            const_spec((hidden, hidden)),                       # w2
            const_spec((hidden, 1)),                            # b2
            const_spec((1, hidden)),                            # w3
            pl.BlockSpec(memory_space=pltpu.MemorySpace.SMEM),  # b3 scalar
        ],
        out_specs=pl.BlockSpec((1, tb), lambda i: (0, i)),      # lane-dense (1, TB)
        compiler_params=pltpu.CompilerParams(
            dimension_semantics=("parallel",),                  # megacore on v7x
            vmem_limit_bytes=vmem_limit,
        ),
        cost_estimate=pl.CostEstimate(flops=flops, transcendentals=0,
                                      bytes_accessed=bytes_accessed),
    )(obs, act, w1o, w1a, b1, w2, b2, w3, b3)

    return out[0, :]   # (B,)  ==  .squeeze(-1)


def init_qfunction_params(key, obs_dim, act_dim, hidden):
    """Deterministic init matching nn.Linear defaults, PyTorch (out, in) layout."""
    dims = [(obs_dim + act_dim, hidden), (hidden, hidden), (hidden, 1)]
    params = []
    for fan_in, fan_out in dims:
        key, kw, kb = jax.random.split(key, 3)
        bound = 1.0 / jnp.sqrt(jnp.float32(fan_in))
        w = jax.random.uniform(kw, (fan_out, fan_in), jnp.float32, -bound, bound)
        b = jax.random.uniform(kb, (fan_out,), jnp.float32, -bound, bound)
        params += [w, b]
    return tuple(params)


def qfunction_reference(obs, act, params):
    """Pure-JAX reference with the same bf16-matmul / f32-accumulate numerics."""
    w1, b1, w2, b2, w3, b3 = params
    x = jnp.concatenate([obs, act], axis=-1).astype(jnp.bfloat16)
    h1 = jnp.maximum(
        jnp.dot(x, w1.T.astype(jnp.bfloat16), preferred_element_type=jnp.float32) + b1,
        0.0).astype(jnp.bfloat16)
    h2 = jnp.maximum(
        jnp.dot(h1, w2.T.astype(jnp.bfloat16), preferred_element_type=jnp.float32) + b2,
        0.0).astype(jnp.bfloat16)
    q = jnp.dot(h2, w3.T.astype(jnp.bfloat16), preferred_element_type=jnp.float32) + b3
    return q[:, 0]


if __name__ == "__main__":
    B, OBS_DIM, ACT_DIM, HIDDEN = 16, 12, 4, 128

    key = jax.random.PRNGKey(0)
    k_obs, k_act, k_params = jax.random.split(key, 3)

    obs = jax.random.normal(k_obs, (B, OBS_DIM), jnp.float32)
    act = jax.random.normal(k_act, (B, ACT_DIM), jnp.float32)
    params = init_qfunction_params(k_params, OBS_DIM, ACT_DIM, HIDDEN)

    # One-time weight prep, outside the hot loop.
    prepared = prepare_qfunction_params(params, OBS_DIM)

    fwd = jax.jit(qfunction_forward)
    q = fwd(obs, act, prepared)
    jax.block_until_ready(q)

    q_ref = qfunction_reference(obs, act, params)
    assert q.shape == (B,), q.shape
    # bf16 MXU matmuls with f32 accumulation: intentional numerics change vs the
    # f32 PyTorch reference, hence the loose tolerance.
    assert jnp.allclose(q, q_ref, atol=1e-2, rtol=1e-2), (q, q_ref)

    print("KERNEL_OK")
</pallas_src>

<mosaic_0001>
module attributes {stable_mosaic.version = 11 : i64} {
  func.func @_qfunc_kernel(%arg0: i32, %arg1: memref<128x12xf32, #tpu.memory_space<vmem>>, %arg2: memref<128x4xf32, #tpu.memory_space<vmem>>, %arg3: memref<128x12xbf16, #tpu.memory_space<vmem>>, %arg4: memref<128x4xbf16, #tpu.memory_space<vmem>>, %arg5: memref<128x1xf32, #tpu.memory_space<vmem>>, %arg6: memref<128x128xbf16, #tpu.memory_space<vmem>>, %arg7: memref<128x1xf32, #tpu.memory_space<vmem>>, %arg8: memref<1x128xbf16, #tpu.memory_space<vmem>>, %arg9: memref<1xf32, #tpu.memory_space<smem>>, %arg10: memref<1x128xf32, #tpu.memory_space<vmem>>) attributes {dimension_semantics = [#tpu.dimension_semantics<parallel>], iteration_bounds = array<i64: 1>, scalar_prefetch = 0 : i64, scratch_operands = 0 : i64, tpu.core_type = #tpu.core_type<tc>, window_params = [{transform_indices = @transform_0, window_bounds = array<i64: 128, 12>}, {transform_indices = @transform_1, window_bounds = array<i64: 128, 4>}, {pipeline_mode = #tpu.pipeline_mode<synchronous>, transform_indices = @transform_2, window_bounds = array<i64: 128, 12>}, {pipeline_mode = #tpu.pipeline_mode<synchronous>, transform_indices = @transform_3, window_bounds = array<i64: 128, 4>}, {pipeline_mode = #tpu.pipeline_mode<synchronous>, transform_indices = @transform_4, window_bounds = array<i64: 128, 1>}, {pipeline_mode = #tpu.pipeline_mode<synchronous>, transform_indices = @transform_5, window_bounds = array<i64: 128, 128>}, {pipeline_mode = #tpu.pipeline_mode<synchronous>, transform_indices = @transform_6, window_bounds = array<i64: 128, 1>}, {pipeline_mode = #tpu.pipeline_mode<synchronous>, transform_indices = @transform_7, window_bounds = array<i64: 1, 128>}, {transform_indices = @transform_8, window_bounds = array<i64: 1>}, {transform_indices = @transform_9, window_bounds = array<i64: 1, 128>}]} {
    %c0 = arith.constant 0 : index
    %c0_0 = arith.constant 0 : index
    %0 = vector.load %arg1[%c0, %c0_0] : memref<128x12xf32, #tpu.memory_space<vmem>>, vector<128x12xf32>
    %1 = arith.truncf %0 : vector<128x12xf32> to vector<128x12xbf16>
    %c0_1 = arith.constant 0 : index
    %c0_2 = arith.constant 0 : index
    %2 = vector.load %arg2[%c0_1, %c0_2] : memref<128x4xf32, #tpu.memory_space<vmem>>, vector<128x4xf32>
    %3 = arith.truncf %2 : vector<128x4xf32> to vector<128x4xbf16>
    %c0_3 = arith.constant 0 : index
    %c0_4 = arith.constant 0 : index
    %4 = vector.load %arg3[%c0_3, %c0_4] : memref<128x12xbf16, #tpu.memory_space<vmem>>, vector<128x12xbf16>
    %cst = arith.constant dense<0.000000e+00> : vector<128x128xf32>
    %5 = tpu.matmul %4, %1, %cst {dimension_numbers = #tpu.dot_dimension_numbers<[1], [1], [0], [0], [0, 0, 1, 0], [], []>} : vector<128x12xbf16>, vector<128x12xbf16>, vector<128x128xf32> -> vector<128x128xf32>
    %c0_5 = arith.constant 0 : index
    %c0_6 = arith.constant 0 : index
    %6 = vector.load %arg4[%c0_5, %c0_6] : memref<128x4xbf16, #tpu.memory_space<vmem>>, vector<128x4xbf16>
    %cst_7 = arith.constant dense<0.000000e+00> : vector<128x128xf32>
    %7 = tpu.matmul %6, %3, %cst_7 {dimension_numbers = #tpu.dot_dimension_numbers<[1], [1], [0], [0], [0, 0, 1, 0], [], []>} : vector<128x4xbf16>, vector<128x4xbf16>, vector<128x128xf32> -> vector<128x128xf32>
    %8 = arith.addf %5, %7 : vector<128x128xf32>
    %c0_8 = arith.constant 0 : index
    %c0_9 = arith.constant 0 : index
    %9 = vector.load %arg5[%c0_8, %c0_9] : memref<128x1xf32, #tpu.memory_space<vmem>>, vector<128x1xf32>
    %10 = vector.broadcast %9 : vector<128x1xf32> to vector<128x128xf32>
    %11 = arith.addf %8, %10 : vector<128x128xf32>
    %cst_10 = arith.constant 0.000000e+00 : f32
    %12 = vector.broadcast %cst_10 : f32 to vector<128x128xf32>
    %13 = arith.maximumf %11, %12 : vector<128x128xf32>
    %14 = arith.truncf %13 : vector<128x128xf32> to vector<128x128xbf16>
    %c0_11 = arith.constant 0 : index
    %c0_12 = arith.constant 0 : index
    %15 = vector.load %arg6[%c0_11, %c0_12] : memref<128x128xbf16, #tpu.memory_space<vmem>>, vector<128x128xbf16>
    %cst_13 = arith.constant dense<0.000000e+00> : vector<128x128xf32>
    %16 = tpu.matmul %15, %14, %cst_13 {dimension_numbers = #tpu.dot_dimension_numbers<[1], [0], [0], [1], [0, 0, 1, 1], [], []>} : vector<128x128xbf16>, vector<128x128xbf16>, vector<128x128xf32> -> vector<128x128xf32>
    %c0_14 = arith.constant 0 : index
    %c0_15 = arith.constant 0 : index
    %17 = vector.load %arg7[%c0_14, %c0_15] : memref<128x1xf32, #tpu.memory_space<vmem>>, vector<128x1xf32>
    %18 = vector.broadcast %17 : vector<128x1xf32> to vector<128x128xf32>
    %19 = arith.addf %16, %18 : vector<128x128xf32>
    %cst_16 = arith.constant 0.000000e+00 : f32
    %20 = vector.broadcast %cst_16 : f32 to vector<128x128xf32>
    %21 = arith.maximumf %19, %20 : vector<128x128xf32>
    %22 = arith.truncf %21 : vector<128x128xf32> to vector<128x128xbf16>
    %c0_17 = arith.constant 0 : index
    %c0_18 = arith.constant 0 : index
    %23 = vector.load %arg8[%c0_17, %c0_18] : memref<1x128xbf16, #tpu.memory_space<vmem>>, vector<1x128xbf16>
    %cst_19 = arith.constant dense<0.000000e+00> : vector<1x128xf32>
    %24 = tpu.matmul %23, %22, %cst_19 {dimension_numbers = #tpu.dot_dimension_numbers<[1], [0], [0], [1], [0, 0, 1, 1], [], []>} : vector<1x128xbf16>, vector<128x128xbf16>, vector<1x128xf32> -> vector<1x128xf32>
    %c0_20 = arith.constant 0 : index
    %25 = memref.load %arg9[%c0_20] : memref<1xf32, #tpu.memory_space<smem>>
    %26 = vector.broadcast %25 : f32 to vector<1x128xf32>
    %27 = arith.addf %24, %26 : vector<1x128xf32>
    %c0_21 = arith.constant 0 : index
    %c0_22 = arith.constant 0 : index
    %28 = vector.load %arg10[%c0_21, %c0_22] : memref<1x128xf32, #tpu.memory_space<vmem>>, vector<1x128xf32>
    tpu.vector_store %arg10[%c0_21, %c0_22], %27 {strides = array<i32>} : memref<1x128xf32, #tpu.memory_space<vmem>>, vector<1x128xf32>,
    return
  }
  func.func @transform_0(%arg0: i32) -> (i32, i32) {
    %c0_i32 = arith.constant 0 : i32
    %c0_i32_0 = arith.constant 0 : i32
    return %arg0, %c0_i32 : i32, i32
  }
  func.func @transform_1(%arg0: i32) -> (i32, i32) {
    %c0_i32 = arith.constant 0 : i32
    %c0_i32_0 = arith.constant 0 : i32
    return %arg0, %c0_i32 : i32, i32
  }
  func.func @transform_2(%arg0: i32) -> (i32, i32) {
    %c0_i32 = arith.constant 0 : i32
    %c0_i32_0 = arith.constant 0 : i32
    %c0_i32_1 = arith.constant 0 : i32
    return %c0_i32, %c0_i32_0 : i32, i32
  }
  func.func @transform_3(%arg0: i32) -> (i32, i32) {
    %c0_i32 = arith.constant 0 : i32
    %c0_i32_0 = arith.constant 0 : i32
    %c0_i32_1 = arith.constant 0 : i32
    return %c0_i32, %c0_i32_0 : i32, i32
  }
  func.func @transform_4(%arg0: i32) -> (i32, i32) {
    %c0_i32 = arith.constant 0 : i32
    %c0_i32_0 = arith.constant 0 : i32
    %c0_i32_1 = arith.constant 0 : i32
    return %c0_i32, %c0_i32_0 : i32, i32
  }
  func.func @transform_5(%arg0: i32) -> (i32, i32) {
    %c0_i32 = arith.constant 0 : i32
    %c0_i32_0 = arith.constant 0 : i32
    %c0_i32_1 = arith.constant 0 : i32
    return %c0_i32, %c0_i32_0 : i32, i32
  }
  func.func @transform_6(%arg0: i32) -> (i32, i32) {
    %c0_i32 = arith.constant 0 : i32
    %c0_i32_0 = arith.constant 0 : i32
    %c0_i32_1 = arith.constant 0 : i32
    return %c0_i32, %c0_i32_0 : i32, i32
  }
  func.func @transform_7(%arg0: i32) -> (i32, i32) {
    %c0_i32 = arith.constant 0 : i32
    %c0_i32_0 = arith.constant 0 : i32
    %c0_i32_1 = arith.constant 0 : i32
    return %c0_i32, %c0_i32_0 : i32, i32
  }
  func.func @transform_8(%arg0: i32) -> i32 {
    %c0_i32 = arith.constant 0 : i32
    %c0_i32_0 = arith.constant 0 : i32
    return %c0_i32 : i32
  }
  func.func @transform_9(%arg0: i32) -> (i32, i32) {
    %c0_i32 = arith.constant 0 : i32
    %c0_i32_0 = arith.constant 0 : i32
    return %c0_i32, %arg0 : i32, i32
  }
}

</mosaic_0001>

<llo_original>
// kernel: qfunction_forward.1
$region0: #{qfunction_forward.1}
  #allocation0 [shape = 'u32[]', space=smem, size = 0x4, offset = 0x4, fixed_abs, tag = 'smem constant byte address 0x4 - core index']
  #allocation1 [shape = 'u32[72,128]{1,0:T(1,128)}', space=vmem, size = 0x9000, scoped, tag = 'internal scratch']
  #allocation2 [shape = 'f32[1]{0:T(128)S(6)}', space=smem, size = 0x200, scoped, tag = 'scoped memory for qfunction_forward.1']
  %s0 = inlined_call_operand.vmem [shape: f32[16,12], index: 0, kind: input, shape index: {}]
  %s1 = inlined_call_operand.vmem [shape: f32[16,4], index: 1, kind: input, shape index: {}]
  %s2 = inlined_call_operand.vmem [shape: bf16[128,12], index: 2, kind: input, shape index: {}]
  %s3 = inlined_call_operand.vmem [shape: bf16[128,4], index: 3, kind: input, shape index: {}]
  %s4 = inlined_call_operand.vmem [shape: f32[128,1], index: 4, kind: input, shape index: {}]
  %s5 = inlined_call_operand.vmem [shape: bf16[128,128], index: 5, kind: input, shape index: {}]
  %s6 = inlined_call_operand.vmem [shape: f32[128,1], index: 6, kind: input, shape index: {}]
  %s7 = inlined_call_operand.vmem [shape: bf16[1,128], index: 7, kind: input, shape index: {}]
  %s8 = inlined_call_operand.<no memory space> [shape: f32[1], index: 8, kind: input, shape index: {}]
  %s9 = inlined_call_operand.hbm [shape: f32[1,16], index: 9, kind: output, shape index: {}]
  %s10 = sld [smem:[#allocation0]]
  $region46: #{qfunction_forward.1} parent=0
    _
  %s12 = ssub.s32 1, %s10
  %s13 = scalar_select 0, %s12, %s10
  %14 = sst [smem:[#allocation2]] %s8
  $region1: #{qfunction_forward.1} parent=0
    #allocation3 [shape = 'u8[512]{0}', space=vmem, size = 0x400, scoped, tag = 'output window, operand 0, single buffered']
    #allocation4 [shape = 's32[1]{0}', space=sflag, size = 0x4, scoped, tag = 'scoped memory for qfunction_forward.1']
    %15 = vsyncpa [#allocation4], 0
    // Predicated region
    $region2: #{qfunction_forward.1} parent=1 // pred_check
      _
    $region3: #{qfunction_forward.1} parent=1 // pred_check_branch
      %17 = sbr.rel (0) target = $region5
    $region4: #{qfunction_forward.1} parent=1 // pred_region
      _
    $region5: #{qfunction_forward.1} parent=1 // pred_fallthru
      _
    // Predicated region
    $region6: #{qfunction_forward.1} parent=1 // pred_check
      _
    $region7: #{qfunction_forward.1} parent=1 // pred_check_branch
      %19 = sbr.rel (0) target = $region9
    $region8: #{qfunction_forward.1} parent=1 // pred_region
      _
    $region9: #{qfunction_forward.1} parent=1 // pred_fallthru
      _
    // Predicated region
    $region10: #{qfunction_forward.1} parent=1 // pred_check
      _
    $region11: #{qfunction_forward.1} parent=1 // pred_check_branch
      %21 = sbr.rel (0) target = $region13
    $region12: #{qfunction_forward.1} parent=1 // pred_region
      _
    $region13: #{qfunction_forward.1} parent=1 // pred_fallthru
      _
    // Predicated region
    $region14: #{qfunction_forward.1} parent=1 // pred_check
      _
    $region15: #{qfunction_forward.1} parent=1 // pred_check_branch
      %23 = sbr.rel (0) target = $region17
    $region16: #{qfunction_forward.1} parent=1 // pred_region
      _
    $region17: #{qfunction_forward.1} parent=1 // pred_fallthru
      _
    // Predicated region
    $region18: #{qfunction_forward.1} parent=1 // pred_check
      _
    $region19: #{qfunction_forward.1} parent=1 // pred_check_branch
      %25 = sbr.rel (0) target = $region21
    $region20: #{qfunction_forward.1} parent=1 // pred_region
      _
    $region21: #{qfunction_forward.1} parent=1 // pred_fallthru
      _
    // Predicated region
    $region22: #{qfunction_forward.1} parent=1 // pred_check
      _
    $region23: #{qfunction_forward.1} parent=1 // pred_check_branch
      %27 = sbr.rel (0) target = $region25
    $region24: #{qfunction_forward.1} parent=1 // pred_region
      _
    $region25: #{qfunction_forward.1} parent=1 // pred_fallthru
      _
    // Predicated region
    $region26: #{qfunction_forward.1} parent=1 // pred_check
      _
    $region27: #{qfunction_forward.1} parent=1 // pred_check_branch
      %29 = sbr.rel (0) target = $region29
    $region28: #{qfunction_forward.1} parent=1 // pred_region
      _
    $region29: #{qfunction_forward.1} parent=1 // pred_fallthru
      _
    // Predicated region
    $region30: #{qfunction_forward.1} parent=1 // pred_check
      _
    $region31: #{qfunction_forward.1} parent=1 // pred_check_branch
      %31 = sbr.rel (0) target = $region33
    $region32: #{qfunction_forward.1} parent=1 // pred_region
      _
    $region33: #{qfunction_forward.1} parent=1 // pred_fallthru
      _
    // Predicated region
    $region34: #{qfunction_forward.1} parent=1 // pred_check
      _
    $region35: #{qfunction_forward.1} parent=1 // pred_check_branch
      %33 = sbr.rel (0) target = $region37
    $region36: #{qfunction_forward.1} parent=1 // pred_region
      _
    $region37: #{qfunction_forward.1} parent=1 // pred_fallthru
      _
    %v34 = vld [vmem:[%s0] sm:$0xff]
    %v35 = vld [vmem:[%s0 + $0x8] sm:$0xff]
    %v36 = vld [vmem:[%s0 + $0x10] sm:$0xff]
    %v37 = vld [vmem:[%s0 + $0x18] sm:$0xff]
    %v38 = vld [vmem:[%s0 + $0x20] sm:$0xff]
    %v39 = vld [vmem:[%s0 + $0x28] sm:$0xff]
    %v40 = vld [vmem:[%s0 + $0x30] sm:$0xff]
    %v41 = vld [vmem:[%s0 + $0x38] sm:$0xff]
    %v42 = vld [vmem:[%s0 + $0x40] sm:$0xff]
    %v43 = vld [vmem:[%s0 + $0x48] sm:$0xff]
    %v44 = vld [vmem:[%s0 + $0x50] sm:$0xff]
    %v45 = vld [vmem:[%s0 + $0x58] sm:$0xff]
    %v46 = vld [vmem:[%s0 + $0x60] sm:$0xff]
    %v47 = vld [vmem:[%s0 + $0x68] sm:$0xff]
    %v48 = vld [vmem:[%s0 + $0x70] sm:$0xff]
    %v49 = vld [vmem:[%s0 + $0x78] sm:$0xff]
    %v50 = vpack.c.bf16 %v35, %v34
    %v51 = vpack.c.bf16 %v37, %v36
    %v52 = vpack.c.bf16 %v39, %v38
    %v53 = vpack.c.bf16 %v41, %v40
    %v54 = vpack.c.bf16 %v43, %v42
    %v55 = vpack.c.bf16 %v45, %v44
    %v56 = vpack.c.bf16 %v47, %v46
    %v57 = vpack.c.bf16 %v49, %v48
    %v58 = vld [vmem:[%s1] sm:$0xff]
    %v59 = vld [vmem:[%s1 + $0x8] sm:$0xff]
    %v60 = vld [vmem:[%s1 + $0x10] sm:$0xff]
    %v61 = vld [vmem:[%s1 + $0x18] sm:$0xff]
    %v62 = vld [vmem:[%s1 + $0x20] sm:$0xff]
    %v63 = vld [vmem:[%s1 + $0x28] sm:$0xff]
    %v64 = vld [vmem:[%s1 + $0x30] sm:$0xff]
    %v65 = vld [vmem:[%s1 + $0x38] sm:$0xff]
    %v66 = vld [vmem:[%s1 + $0x40] sm:$0xff]
    %v67 = vld [vmem:[%s1 + $0x48] sm:$0xff]
    %v68 = vld [vmem:[%s1 + $0x50] sm:$0xff]
    %v69 = vld [vmem:[%s1 + $0x58] sm:$0xff]
    %v70 = vld [vmem:[%s1 + $0x60] sm:$0xff]
    %v71 = vld [vmem:[%s1 + $0x68] sm:$0xff]
    %v72 = vld [vmem:[%s1 + $0x70] sm:$0xff]
    %v73 = vld [vmem:[%s1 + $0x78] sm:$0xff]
    %v74 = vpack.c.bf16 %v59, %v58
    %v75 = vpack.c.bf16 %v61, %v60
    %v76 = vpack.c.bf16 %v63, %v62
    %v77 = vpack.c.bf16 %v65, %v64
    %v78 = vpack.c.bf16 %v67, %v66
    %v79 = vpack.c.bf16 %v69, %v68
    %v80 = vpack.c.bf16 %v71, %v70
    %v81 = vpack.c.bf16 %v73, %v72
    %v82 = vld [vmem:[%s2] sm:$0xf]
    %v83 = vld [vmem:[%s2 + $0x4] sm:$0xf]
    %v84 = vld [vmem:[%s2 + $0x8] sm:$0xf]
    %v85 = vld [vmem:[%s2 + $0xc] sm:$0xf]
    %v86 = vld [vmem:[%s2 + $0x10] sm:$0xf]
    %v87 = vld [vmem:[%s2 + $0x14] sm:$0xf]
    %v88 = vld [vmem:[%s2 + $0x18] sm:$0xf]
    %v89 = vld [vmem:[%s2 + $0x1c] sm:$0xf]
    %v90 = vld [vmem:[%s2 + $0x20] sm:$0xf]
    %v91 = vld [vmem:[%s2 + $0x24] sm:$0xf]
    %v92 = vld [vmem:[%s2 + $0x28] sm:$0xf]
    %v93 = vld [vmem:[%s2 + $0x2c] sm:$0xf]
    %v94 = vld [vmem:[%s2 + $0x30] sm:$0xf]
    %v95 = vld [vmem:[%s2 + $0x34] sm:$0xf]
    %v96 = vld [vmem:[%s2 + $0x38] sm:$0xf]
    %v97 = vld [vmem:[%s2 + $0x3c] sm:$0xf]
    %v98 = vld [vmem:[%s3] sm:$0xf]
    %v99 = vld [vmem:[%s3 + $0x4] sm:$0xf]
    %v100 = vld [vmem:[%s3 + $0x8] sm:$0xf]
    %v101 = vld [vmem:[%s3 + $0xc] sm:$0xf]
    %v102 = vld [vmem:[%s3 + $0x10] sm:$0xf]
    %v103 = vld [vmem:[%s3 + $0x14] sm:$0xf]
    %v104 = vld [vmem:[%s3 + $0x18] sm:$0xf]
    %v105 = vld [vmem:[%s3 + $0x1c] sm:$0xf]
    %v106 = vld [vmem:[%s3 + $0x20] sm:$0xf]
    %v107 = vld [vmem:[%s3 + $0x24] sm:$0xf]
    %v108 = vld [vmem:[%s3 + $0x28] sm:$0xf]
    %v109 = vld [vmem:[%s3 + $0x2c] sm:$0xf]
    %v110 = vld [vmem:[%s3 + $0x30] sm:$0xf]
    %v111 = vld [vmem:[%s3 + $0x34] sm:$0xf]
    %v112 = vld [vmem:[%s3 + $0x38] sm:$0xf]
    %v113 = vld [vmem:[%s3 + $0x3c] sm:$0xf]
    %v130 = vunpack.c.l.b16 %v98
    %v131 = vunpack.c.l.b16 %v99
    %v132 = vunpack.c.l.b16 %v100
    %v133 = vunpack.c.l.b16 %v101
    %v134 = vunpack.c.l.b16 %v102
    %v135 = vunpack.c.l.b16 %v103
    %v136 = vunpack.c.l.b16 %v104
    %v137 = vunpack.c.l.b16 %v105
    %v138 = vunpack.c.l.b16 %v106
    %v139 = vunpack.c.l.b16 %v107
    %v140 = vunpack.c.l.b16 %v108
    %v141 = vunpack.c.l.b16 %v109
    %v142 = vunpack.c.l.b16 %v110
    %v143 = vunpack.c.l.b16 %v111
    %v144 = vunpack.c.l.b16 %v112
    %v145 = vunpack.c.l.b16 %v113
    %v146 = vpack.c.b16 %v131, %v130
    %v147 = vpack.c.b16 %v133, %v132
    %v148 = vpack.c.b16 %v135, %v134
    %v149 = vpack.c.b16 %v137, %v136
    %v150 = vpack.c.b16 %v139, %v138
    %v151 = vpack.c.b16 %v141, %v140
    %v152 = vpack.c.b16 %v143, %v142
    %v153 = vpack.c.b16 %v145, %v144
    %vm154 = vcmask 31744
    %v156 = vsel %vm154, %v146, 0
    %v159 = vsel %vm154, %v147, 0
    %v162 = vsel %vm154, %v148, 0
    %v165 = vsel %vm154, %v149, 0
    %v168 = vsel %vm154, %v150, 0
    %v171 = vsel %vm154, %v151, 0
    %v174 = vsel %vm154, %v152, 0
    %v177 = vsel %vm154, %v153, 0
    %v180 = vsel %vm154, %v74, 0
    %v183 = vsel %vm154, %v75, 0
    %v186 = vsel %vm154, %v76, 0
    %v189 = vsel %vm154, %v77, 0
    %v192 = vsel %vm154, %v78, 0
    %v195 = vsel %vm154, %v79, 0
    %v198 = vsel %vm154, %v80, 0
    %v201 = vsel %vm154, %v81, 0
    %203 = vmatpush.bf16.xpose.msra.mxu0 %v201
    %204 = vmatpush.bf16.xpose.msra.mxu0 %v198
    %205 = vmatpush.bf16.xpose.msra.mxu0 %v195
    %206 = vmatpush.bf16.xpose.msra.mxu0 %v192
    %207 = vmatpush.bf16.xpose.msra.mxu0 %v189
    %208 = vmatpush.bf16.xpose.msra.mxu0 %v186
    %209 = vmatpush.bf16.xpose.msra.mxu0 %v183
    %210 = vmatpush.bf16.xpose.msra.mxu0 %v180
    %211 = vmatmul.bf16.gmra.mxu0 %v156
    %v212 = vpop.f32.mrf.mxu0
    %v213 = vadd.f32 0.0, %v212
    %v214 = vpop.f32.mrf.mxu0
    %v215 = vadd.f32 0.0, %v214
    %216 = vmatmul.bf16.gmra.mxu0 %v159
    %v217 = vpop.f32.mrf.mxu0
    %v218 = vadd.f32 0.0, %v217
    %v219 = vpop.f32.mrf.mxu0
    %v220 = vadd.f32 0.0, %v219
    %221 = vmatmul.bf16.gmra.mxu0 %v162
    %v222 = vpop.f32.mrf.mxu0
    %v223 = vadd.f32 0.0, %v222
    %v224 = vpop.f32.mrf.mxu0
    %v225 = vadd.f32 0.0, %v224
    %226 = vmatmul.bf16.gmra.mxu0 %v165
    %v227 = vpop.f32.mrf.mxu0
    %v228 = vadd.f32 0.0, %v227
    %v229 = vpop.f32.mrf.mxu0
    %v230 = vadd.f32 0.0, %v229
    %231 = vmatmul.bf16.gmra.mxu0 %v168
    %v232 = vpop.f32.mrf.mxu0
    %v233 = vadd.f32 0.0, %v232
    %v234 = vpop.f32.mrf.mxu0
    %v235 = vadd.f32 0.0, %v234
    %236 = vmatmul.bf16.gmra.mxu0 %v171
    %v237 = vpop.f32.mrf.mxu0
    %v238 = vadd.f32 0.0, %v237
    %v239 = vpop.f32.mrf.mxu0
    %v240 = vadd.f32 0.0, %v239
    %241 = vmatmul.bf16.gmra.mxu0 %v174
    %v242 = vpop.f32.mrf.mxu0
    %v243 = vadd.f32 0.0, %v242
    %v244 = vpop.f32.mrf.mxu0
    %v245 = vadd.f32 0.0, %v244
    %246 = vmatmul.bf16.gmra.mxu0 %v177
    %v247 = vpop.f32.mrf.mxu0
    %v248 = vadd.f32 0.0, %v247
    %v249 = vpop.f32.mrf.mxu0
    %v250 = vadd.f32 0.0, %v249
    %251 = vdwg.mxu0
    %v268 = vunpack.c.l.b16 %v82
    %v269 = vunpack.c.l.b16 %v83
    %v270 = vunpack.c.l.b16 %v84
    %v271 = vunpack.c.l.b16 %v85
    %v272 = vunpack.c.l.b16 %v86
    %v273 = vunpack.c.l.b16 %v87
    %v274 = vunpack.c.l.b16 %v88
    %v275 = vunpack.c.l.b16 %v89
    %v276 = vunpack.c.l.b16 %v90
    %v277 = vunpack.c.l.b16 %v91
    %v278 = vunpack.c.l.b16 %v92
    %v279 = vunpack.c.l.b16 %v93
    %v280 = vunpack.c.l.b16 %v94
    %v281 = vunpack.c.l.b16 %v95
    %v282 = vunpack.c.l.b16 %v96
    %v283 = vunpack.c.l.b16 %v97
    %v284 = vpack.c.b16 %v269, %v268
    %v285 = vpack.c.b16 %v271, %v270
    %v286 = vpack.c.b16 %v273, %v272
    %v287 = vpack.c.b16 %v275, %v274
    %v288 = vpack.c.b16 %v277, %v276
    %v289 = vpack.c.b16 %v279, %v278
    %v290 = vpack.c.b16 %v281, %v280
    %v291 = vpack.c.b16 %v283, %v282
    %vm292 = vcmask 97280
    %v294 = vsel %vm292, %v284, 0
    %v297 = vsel %vm292, %v285, 0
    %v300 = vsel %vm292, %v286, 0
    %v303 = vsel %vm292, %v287, 0
    %v306 = vsel %vm292, %v288, 0
    %v309 = vsel %vm292, %v289, 0
    %v312 = vsel %vm292, %v290, 0
    %v315 = vsel %vm292, %v291, 0
    %v318 = vsel %vm292, %v50, 0
    %v321 = vsel %vm292, %v51, 0
    %v324 = vsel %vm292, %v52, 0
    %v327 = vsel %vm292, %v53, 0
    %v330 = vsel %vm292, %v54, 0
    %v333 = vsel %vm292, %v55, 0
    %v336 = vsel %vm292, %v56, 0
    %v339 = vsel %vm292, %v57, 0
    %341 = vmatpush.bf16.xpose.msra.mxu0 %v339
    %342 = vmatpush.bf16.xpose.msra.mxu0 %v336
    %343 = vmatpush.bf16.xpose.msra.mxu0 %v333
    %344 = vmatpush.bf16.xpose.msra.mxu0 %v330
    %345 = vmatpush.bf16.xpose.msra.mxu0 %v327
    %346 = vmatpush.bf16.xpose.msra.mxu0 %v324
    %347 = vmatpush.bf16.xpose.msra.mxu0 %v321
    %348 = vmatpush.bf16.xpose.msra.mxu0 %v318
    %349 = vmatmul.bf16.gmra.mxu0 %v294
    %v350 = vpop.f32.mrf.mxu0
    %v351 = vadd.f32 %v213, %v350
    %v352 = vpop.f32.mrf.mxu0
    %v353 = vadd.f32 %v215, %v352
    %354 = vmatmul.bf16.gmra.mxu0 %v297
    %v355 = vpop.f32.mrf.mxu0
    %v356 = vadd.f32 %v218, %v355
    %v357 = vpop.f32.mrf.mxu0
    %v358 = vadd.f32 %v220, %v357
    %359 = vmatmul.bf16.gmra.mxu0 %v300
    %v360 = vpop.f32.mrf.mxu0
    %v361 = vadd.f32 %v223, %v360
    %v362 = vpop.f32.mrf.mxu0
    %v363 = vadd.f32 %v225, %v362
    %364 = vmatmul.bf16.gmra.mxu0 %v303
    %v365 = vpop.f32.mrf.mxu0
    %v366 = vadd.f32 %v228, %v365
    %v367 = vpop.f32.mrf.mxu0
    %v368 = vadd.f32 %v230, %v367
    %369 = vmatmul.bf16.gmra.mxu0 %v306
    %v370 = vpop.f32.mrf.mxu0
    %v371 = vadd.f32 %v233, %v370
    %v372 = vpop.f32.mrf.mxu0
    %v373 = vadd.f32 %v235, %v372
    %374 = vmatmul.bf16.gmra.mxu0 %v309
    %v375 = vpop.f32.mrf.mxu0
    %v376 = vadd.f32 %v238, %v375
    %v377 = vpop.f32.mrf.mxu0
    %v378 = vadd.f32 %v240, %v377
    %379 = vmatmul.bf16.gmra.mxu0 %v312
    %v380 = vpop.f32.mrf.mxu0
    %v381 = vadd.f32 %v243, %v380
    %v382 = vpop.f32.mrf.mxu0
    %v383 = vadd.f32 %v245, %v382
    %384 = vmatmul.bf16.gmra.mxu0 %v315
    %v385 = vpop.f32.mrf.mxu0
    %v386 = vadd.f32 %v248, %v385
    %v387 = vpop.f32.mrf.mxu0
    %v388 = vadd.f32 %v250, %v387
    %389 = vdwg.mxu0
    %v390 = vld [vmem:[%s4] sm:$0xff]
    %v391 = vld [vmem:[%s4 + $0x8] sm:$0xff]
    %v392 = vld [vmem:[%s4 + $0x10] sm:$0xff]
    %v393 = vld [vmem:[%s4 + $0x18] sm:$0xff]
    %v394 = vld [vmem:[%s4 + $0x20] sm:$0xff]
    %v395 = vld [vmem:[%s4 + $0x28] sm:$0xff]
    %v396 = vld [vmem:[%s4 + $0x30] sm:$0xff]
    %v397 = vld [vmem:[%s4 + $0x38] sm:$0xff]
    %v398 = vld [vmem:[%s4 + $0x40] sm:$0xff]
    %v399 = vld [vmem:[%s4 + $0x48] sm:$0xff]
    %v400 = vld [vmem:[%s4 + $0x50] sm:$0xff]
    %v401 = vld [vmem:[%s4 + $0x58] sm:$0xff]
    %v402 = vld [vmem:[%s4 + $0x60] sm:$0xff]
    %v403 = vld [vmem:[%s4 + $0x68] sm:$0xff]
    %v404 = vld [vmem:[%s4 + $0x70] sm:$0xff]
    %v405 = vld [vmem:[%s4 + $0x78] sm:$0xff]
    %407 = vset.pattern.permute.xlu0 0
    %408 = vperm.xlu0 %407, %v390
    %v409 = vpop.permute.xlu0 %408
    %412 = vset.pattern.permute.xlu0 0
    %413 = vperm.xlu0 %412, %v391
    %v414 = vpop.permute.xlu0 %413
    %417 = vset.pattern.permute.xlu0 0
    %418 = vperm.xlu0 %417, %v392
    %v419 = vpop.permute.xlu0 %418
    %422 = vset.pattern.permute.xlu0 0
    %423 = vperm.xlu0 %422, %v393
    %v424 = vpop.permute.xlu0 %423
    %427 = vset.pattern.permute.xlu0 0
    %428 = vperm.xlu0 %427, %v394
    %v429 = vpop.permute.xlu0 %428
    %432 = vset.pattern.permute.xlu0 0
    %433 = vperm.xlu0 %432, %v395
    %v434 = vpop.permute.xlu0 %433
    %437 = vset.pattern.permute.xlu0 0
    %438 = vperm.xlu0 %437, %v396
    %v439 = vpop.permute.xlu0 %438
    %442 = vset.pattern.permute.xlu0 0
    %443 = vperm.xlu0 %442, %v397
    %v444 = vpop.permute.xlu0 %443
    %447 = vset.pattern.permute.xlu0 0
    %448 = vperm.xlu0 %447, %v398
    %v449 = vpop.permute.xlu0 %448
    %452 = vset.pattern.permute.xlu0 0
    %453 = vperm.xlu0 %452, %v399
    %v454 = vpop.permute.xlu0 %453
    %457 = vset.pattern.permute.xlu0 0
    %458 = vperm.xlu0 %457, %v400
    %v459 = vpop.permute.xlu0 %458
    %462 = vset.pattern.permute.xlu0 0
    %463 = vperm.xlu0 %462, %v401
    %v464 = vpop.permute.xlu0 %463
    %467 = vset.pattern.permute.xlu0 0
    %468 = vperm.xlu0 %467, %v402
    %v469 = vpop.permute.xlu0 %468
    %472 = vset.pattern.permute.xlu0 0
    %473 = vperm.xlu0 %472, %v403
    %v474 = vpop.permute.xlu0 %473
    %477 = vset.pattern.permute.xlu0 0
    %478 = vperm.xlu0 %477, %v404
    %v479 = vpop.permute.xlu0 %478
    %482 = vset.pattern.permute.xlu0 0
    %483 = vperm.xlu0 %482, %v405
    %v484 = vpop.permute.xlu0 %483
    %v486 = vadd.f32 %v351, %v409
    %v487 = vadd.f32 %v353, %v414
    %v488 = vadd.f32 %v356, %v419
    %v489 = vadd.f32 %v358, %v424
    %v490 = vadd.f32 %v361, %v429
    %v491 = vadd.f32 %v363, %v434
    %v492 = vadd.f32 %v366, %v439
    %v493 = vadd.f32 %v368, %v444
    %v494 = vadd.f32 %v371, %v449
    %v495 = vadd.f32 %v373, %v454
    %v496 = vadd.f32 %v376, %v459
    %v497 = vadd.f32 %v378, %v464
    %v498 = vadd.f32 %v381, %v469
    %v499 = vadd.f32 %v383, %v474
    %v500 = vadd.f32 %v386, %v479
    %v501 = vadd.f32 %v388, %v484
    %v502 = vmax.f32 %v486, 0.0
    %v503 = vmax.f32 %v487, 0.0
    %v504 = vmax.f32 %v488, 0.0
    %v505 = vmax.f32 %v489, 0.0
    %v506 = vmax.f32 %v490, 0.0
    %v507 = vmax.f32 %v491, 0.0
    %v508 = vmax.f32 %v492, 0.0
    %v509 = vmax.f32 %v493, 0.0
    %v510 = vmax.f32 %v494, 0.0
    %v511 = vmax.f32 %v495, 0.0
    %v512 = vmax.f32 %v496, 0.0
    %v513 = vmax.f32 %v497, 0.0
    %v514 = vmax.f32 %v498, 0.0
    %v515 = vmax.f32 %v499, 0.0
    %v516 = vmax.f32 %v500, 0.0
    %v517 = vmax.f32 %v501, 0.0
    %v518 = vpack.c.bf16 %v503, %v502
    %v519 = vpack.c.bf16 %v505, %v504
    %v520 = vpack.c.bf16 %v507, %v506
    %v521 = vpack.c.bf16 %v509, %v508
    %v522 = vpack.c.bf16 %v511, %v510
    %v523 = vpack.c.bf16 %v513, %v512
    %v524 = vpack.c.bf16 %v515, %v514
    %v525 = vpack.c.bf16 %v517, %v516
    %v526 = vld [vmem:[%s5] sm:$0xf]
    %v527 = vld [vmem:[%s5 + $0x4] sm:$0xf]
    %v528 = vld [vmem:[%s5 + $0x8] sm:$0xf]
    %v529 = vld [vmem:[%s5 + $0xc] sm:$0xf]
    %v530 = vld [vmem:[%s5 + $0x10] sm:$0xf]
    %v531 = vld [vmem:[%s5 + $0x14] sm:$0xf]
    %v532 = vld [vmem:[%s5 + $0x18] sm:$0xf]
    %v533 = vld [vmem:[%s5 + $0x1c] sm:$0xf]
    %v534 = vld [vmem:[%s5 + $0x20] sm:$0xf]
    %v535 = vld [vmem:[%s5 + $0x24] sm:$0xf]
    %v536 = vld [vmem:[%s5 + $0x28] sm:$0xf]
    %v537 = vld [vmem:[%s5 + $0x2c] sm:$0xf]
    %v538 = vld [vmem:[%s5 + $0x30] sm:$0xf]
    %v539 = vld [vmem:[%s5 + $0x34] sm:$0xf]
    %v540 = vld [vmem:[%s5 + $0x38] sm:$0xf]
    %v541 = vld [vmem:[%s5 + $0x3c] sm:$0xf]
    %v542 = vld [vmem:[%s6] sm:$0xff]
    %v543 = vld [vmem:[%s6 + $0x8] sm:$0xff]
    %v544 = vld [vmem:[%s6 + $0x10] sm:$0xff]
    %v545 = vld [vmem:[%s6 + $0x18] sm:$0xff]
    %v546 = vld [vmem:[%s6 + $0x20] sm:$0xff]
    %v547 = vld [vmem:[%s6 + $0x28] sm:$0xff]
    %v548 = vld [vmem:[%s6 + $0x30] sm:$0xff]
    %v549 = vld [vmem:[%s6 + $0x38] sm:$0xff]
    %v550 = vld [vmem:[%s6 + $0x40] sm:$0xff]
    %v551 = vld [vmem:[%s6 + $0x48] sm:$0xff]
    %v552 = vld [vmem:[%s6 + $0x50] sm:$0xff]
    %v553 = vld [vmem:[%s6 + $0x58] sm:$0xff]
    %v554 = vld [vmem:[%s6 + $0x60] sm:$0xff]
    %v555 = vld [vmem:[%s6 + $0x68] sm:$0xff]
    %v556 = vld [vmem:[%s6 + $0x70] sm:$0xff]
    %v557 = vld [vmem:[%s6 + $0x78] sm:$0xff]
    %559 = vset.pattern.permute.xlu0 0
    %560 = vperm.xlu0 %559, %v542
    %v561 = vpop.permute.xlu0 %560
    %564 = vset.pattern.permute.xlu0 0
    %565 = vperm.xlu0 %564, %v543
    %v566 = vpop.permute.xlu0 %565
    %569 = vset.pattern.permute.xlu0 0
    %570 = vperm.xlu0 %569, %v544
    %v571 = vpop.permute.xlu0 %570
    %574 = vset.pattern.permute.xlu0 0
    %575 = vperm.xlu0 %574, %v545
    %v576 = vpop.permute.xlu0 %575
    %579 = vset.pattern.permute.xlu0 0
    %580 = vperm.xlu0 %579, %v546
    %v581 = vpop.permute.xlu0 %580
    %584 = vset.pattern.permute.xlu0 0
    %585 = vperm.xlu0 %584, %v547
    %v586 = vpop.permute.xlu0 %585
    %589 = vset.pattern.permute.xlu0 0
    %590 = vperm.xlu0 %589, %v548
    %v591 = vpop.permute.xlu0 %590
    %594 = vset.pattern.permute.xlu0 0
    %595 = vperm.xlu0 %594, %v549
    %v596 = vpop.permute.xlu0 %595
    %599 = vset.pattern.permute.xlu0 0
    %600 = vperm.xlu0 %599, %v550
    %v601 = vpop.permute.xlu0 %600
    %604 = vset.pattern.permute.xlu0 0
    %605 = vperm.xlu0 %604, %v551
    %v606 = vpop.permute.xlu0 %605
    %609 = vset.pattern.permute.xlu0 0
    %610 = vperm.xlu0 %609, %v552
    %v611 = vpop.permute.xlu0 %610
    %614 = vset.pattern.permute.xlu0 0
    %615 = vperm.xlu0 %614, %v553
    %v616 = vpop.permute.xlu0 %615
    %619 = vset.pattern.permute.xlu0 0
    %620 = vperm.xlu0 %619, %v554
    %v621 = vpop.permute.xlu0 %620
    %624 = vset.pattern.permute.xlu0 0
    %625 = vperm.xlu0 %624, %v555
    %v626 = vpop.permute.xlu0 %625
    %629 = vset.pattern.permute.xlu0 0
    %630 = vperm.xlu0 %629, %v556
    %v631 = vpop.permute.xlu0 %630
    %634 = vset.pattern.permute.xlu0 0
    %635 = vperm.xlu0 %634, %v557
    %v636 = vpop.permute.xlu0 %635
    %v654 = vunpack.c.l.b16 %v526
    %v655 = vunpack.c.l.b16 %v527
    %v656 = vunpack.c.l.b16 %v528
    %v657 = vunpack.c.l.b16 %v529
    %v658 = vunpack.c.l.b16 %v530
    %v659 = vunpack.c.l.b16 %v531
    %v660 = vunpack.c.l.b16 %v532
    %v661 = vunpack.c.l.b16 %v533
    %v662 = vunpack.c.l.b16 %v534
    %v663 = vunpack.c.l.b16 %v535
    %v664 = vunpack.c.l.b16 %v536
    %v665 = vunpack.c.l.b16 %v537
    %v666 = vunpack.c.l.b16 %v538
    %v667 = vunpack.c.l.b16 %v539
    %v668 = vunpack.c.l.b16 %v540
    %v669 = vunpack.c.l.b16 %v541
    %v670 = vpack.c.b16 %v655, %v654
    %v671 = vpack.c.b16 %v657, %v656
    %v672 = vpack.c.b16 %v659, %v658
    %v673 = vpack.c.b16 %v661, %v660
    %v674 = vpack.c.b16 %v663, %v662
    %v675 = vpack.c.b16 %v665, %v664
    %v676 = vpack.c.b16 %v667, %v666
    %v677 = vpack.c.b16 %v669, %v668
    %686 = vmatpush.bf16.msra.mxu0 %v525
    %687 = vmatpush.bf16.msra.mxu0 %v524
    %688 = vmatpush.bf16.msra.mxu0 %v523
    %689 = vmatpush.bf16.msra.mxu0 %v522
    %690 = vmatpush.bf16.msra.mxu0 %v521
    %691 = vmatpush.bf16.msra.mxu0 %v520
    %692 = vmatpush.bf16.msra.mxu0 %v519
    %693 = vmatpush.bf16.msra.mxu0 %v518
    %694 = vmatmul.bf16.gmra.mxu0 %v670
    %v695 = vpop.f32.mrf.mxu0
    %v696 = vadd.f32 %v561, %v695
    %v697 = vpop.f32.mrf.mxu0
    %v698 = vadd.f32 %v566, %v697
    %699 = vmatmul.bf16.gmra.mxu0 %v671
    %v700 = vpop.f32.mrf.mxu0
    %v701 = vadd.f32 %v571, %v700
    %v702 = vpop.f32.mrf.mxu0
    %v703 = vadd.f32 %v576, %v702
    %704 = vmatmul.bf16.gmra.mxu0 %v672
    %v705 = vpop.f32.mrf.mxu0
    %v706 = vadd.f32 %v581, %v705
    %v707 = vpop.f32.mrf.mxu0
    %v708 = vadd.f32 %v586, %v707
    %709 = vmatmul.bf16.gmra.mxu0 %v673
    %v710 = vpop.f32.mrf.mxu0
    %v711 = vadd.f32 %v591, %v710
    %v712 = vpop.f32.mrf.mxu0
    %v713 = vadd.f32 %v596, %v712
    %714 = vmatmul.bf16.gmra.mxu0 %v674
    %v715 = vpop.f32.mrf.mxu0
    %v716 = vadd.f32 %v601, %v715
    %v717 = vpop.f32.mrf.mxu0
    %v718 = vadd.f32 %v606, %v717
    %719 = vmatmul.bf16.gmra.mxu0 %v675
    %v720 = vpop.f32.mrf.mxu0
    %v721 = vadd.f32 %v611, %v720
    %v722 = vpop.f32.mrf.mxu0
    %v723 = vadd.f32 %v616, %v722
    %724 = vmatmul.bf16.gmra.mxu0 %v676
    %v725 = vpop.f32.mrf.mxu0
    %v726 = vadd.f32 %v621, %v725
    %v727 = vpop.f32.mrf.mxu0
    %v728 = vadd.f32 %v626, %v727
    %729 = vmatmul.bf16.gmra.mxu0 %v677
    %v730 = vpop.f32.mrf.mxu0
    %v731 = vadd.f32 %v631, %v730
    %v732 = vpop.f32.mrf.mxu0
    %v733 = vadd.f32 %v636, %v732
    %734 = vdwg.mxu0
    %v735 = vmax.f32 %v696, 0.0
    %v736 = vmax.f32 %v698, 0.0
    %v737 = vmax.f32 %v701, 0.0
    %v738 = vmax.f32 %v703, 0.0
    %v739 = vmax.f32 %v706, 0.0
    %v740 = vmax.f32 %v708, 0.0
    %v741 = vmax.f32 %v711, 0.0
    %v742 = vmax.f32 %v713, 0.0
    %v743 = vmax.f32 %v716, 0.0
    %v744 = vmax.f32 %v718, 0.0
    %v745 = vmax.f32 %v721, 0.0
    %v746 = vmax.f32 %v723, 0.0
    %v747 = vmax.f32 %v726, 0.0
    %v748 = vmax.f32 %v728, 0.0
    %v749 = vmax.f32 %v731, 0.0
    %v750 = vmax.f32 %v733, 0.0
    %v751 = vpack.c.bf16 %v736, %v735
    %v752 = vpack.c.bf16 %v738, %v737
    %v753 = vpack.c.bf16 %v740, %v739
    %v754 = vpack.c.bf16 %v742, %v741
    %v755 = vpack.c.bf16 %v744, %v743
    %v756 = vpack.c.bf16 %v746, %v745
    %v757 = vpack.c.bf16 %v748, %v747
    %v758 = vpack.c.bf16 %v750, %v749
    %v759 = vld [vmem:[%s7] sm:$0x1]
    %s760 = sld [smem:[#allocation2]]
    %v761 = vstv %s760
    %762 = vmatpush.bf16.msra.mxu0 %v758
    %763 = vmatpush.bf16.msra.mxu0 %v757
    %764 = vmatpush.bf16.msra.mxu0 %v756
    %765 = vmatpush.bf16.msra.mxu0 %v755
    %766 = vmatpush.bf16.msra.mxu0 %v754
    %767 = vmatpush.bf16.msra.mxu0 %v753
    %768 = vmatpush.bf16.msra.mxu0 %v752
    %769 = vmatpush.bf16.msra.mxu0 %v751
    %770 = vmatmul.bf16.gmra.mxu0 %v759
    %v771 = vpop.f32.mrf.mxu0
    %v772 = vadd.f32 %v761, %v771
    %v773 = vpop.f32.mrf.mxu0
    %774 = vdwg.mxu0
    %775 = vst [vmem:[#allocation3] sm:$0x1] %v772
    // Predicated region
    $region38: #{qfunction_forward.1} parent=1 // pred_check
      _
    $region39: #{qfunction_forward.1} parent=1 // pred_check_branch
      %777 = sbr.rel (0) target = $region41
    $region40: #{qfunction_forward.1} parent=1 // pred_region
      %779 = vsyncadd [#allocation4], 0
      %s781 = sshll.u32 [#allocation3], 4
      %s782 = int_to_ptr.vmem [resolvable:$true] %s781
      %s783 = sshll.u32 %s9, 4
      %s784 = int_to_ptr.hbm [resolvable:$true] %s783
      %786 = dma.vmem_to_hbm [thread:$0]  %s782, 16, %s784, [#allocation4]
    $region41: #{qfunction_forward.1} parent=1 // pred_fallthru
      _
    // Predicated region
    $region42: #{qfunction_forward.1} parent=1 // pred_check
      _
    $region43: #{qfunction_forward.1} parent=1 // pred_check_branch
      %788 = sbr.rel (0) target = $region45
    $region44: #{qfunction_forward.1} parent=1 // pred_region
      %790 = dma.done [#allocation4], 16
    $region45: #{qfunction_forward.1} parent=1 // pred_fallthru
      _
    %791 = vsyncpa [#allocation4], 1

</llo_original>
